<compile_context>
chip_gen: v7x
topology: tpu7x:2x2x1
jax: 0.10.0
libtpu: 0.0.40
codegen_flags: <defaults>
</compile_context>

<pallas_src>
import functools
import math

import jax
import jax.numpy as jnp
from jax.experimental import pallas as pl
from jax.experimental.pallas import tpu as pltpu


def _phuber_ce_kernel(logits_ref, target_ref, loss_ref, *, tau, boundary):
    """Per-row PHuber loss for one (TM, C) tile of logits."""
    x = logits_ref[...].astype(jnp.float32)           # (TM, C) in-kernel upcast
    t = target_ref[...]                                # (TM, 1) int32
    tm, n_cls = x.shape

    # Numerically stable log-softmax pieces along the class (lane) axis.
    row_max = jnp.max(x, axis=1, keepdims=True)        # (TM, 1)  XLU
    xs = x - row_max                                    # (TM, C)  shifted logits (reused)
    denom = jnp.sum(jnp.exp(xs), axis=1, keepdims=True)  # (TM, 1)  EUP + XLU

    # Gather xs[i, t[i]] with a one-hot mask (no cross-lane gather needed).
    class_ids = jax.lax.broadcasted_iota(jnp.int32, (tm, n_cls), 1)
    xs_t = jnp.sum(jnp.where(class_ids == t, xs, 0.0), axis=1, keepdims=True)

    # log p_t in log-sum-exp form; p_t itself only feeds the clipped branch.
    logp_t = xs_t - jnp.log(denom)                      # (TM, 1)
    p_t = jnp.exp(logp_t)                               # (TM, 1)  EUP

    loss_ref[...] = jnp.where(p_t <= 1.0 / tau, -tau * p_t + boundary, -logp_t)


def _vmem_budget_bytes():
    """Per-generation (working-set budget, vmem_limit) in bytes."""
    try:
        phys = int(pltpu.get_tpu_info().vmem_capacity_bytes)
    except Exception:
        phys = 64 * 1024 * 1024  # conservative: assume a 64 MiB (v7x-class) part
    if phys >= 100 * 1024 * 1024:          # v5e / v6e: 128 MiB physical VMEM
        return 40 * 1024 * 1024, 64 * 1024 * 1024
    else:                                   # v7x-class: 64 MiB physical per TC
        return 22 * 1024 * 1024, 32 * 1024 * 1024


def phuber_cross_entropy(logits: jax.Array, targets: jax.Array,
                         tau: float = 10.0,
                         block_rows: int | None = None) -> jax.Array:
    """Pallas TPU implementation of PHuberCrossEntropy.forward.

    logits:  (N, C) float (bf16 or f32, passed through in native dtype).
    targets: (N,)   int   class indices in [0, C-1].
    returns: scalar float32 mean loss.
    """
    assert logits.ndim == 2 and targets.ndim == 1
    N, C = logits.shape
    itemsize = jnp.dtype(logits.dtype).itemsize
    # Sublane packing for the input dtype: 8 rows for f32, 16 for bf16, ...
    sublanes = 8 * max(1, 4 // itemsize)

    total_budget, vmem_limit = _vmem_budget_bytes()

    if N <= sublanes:
        # Single tile equal to the full row extent (block dim == array dim is
        # always a legal block shape, even when N is not sublane-aligned).
        tm = N
    else:
        if block_rows is None:
            # Total working set per logit element:
            #   2 * itemsize       double-buffered native-dtype input block
            #   ~16 B              full-tile f32 temporaries (xs, exp, iota, mask)
            bytes_per_elem = 2 * itemsize + 16
            per_row = C * bytes_per_elem + 64      # + tiny per-row vectors
            block_rows = total_budget // max(per_row, 1)
            block_rows = max(sublanes,
                             (min(block_rows, 8192) // sublanes) * sublanes)
        else:
            block_rows = max(sublanes, (block_rows // sublanes) * sublanes)

        # Never taller than the sublane-aligned portion of N (the last block
        # stays a standard partial block rather than block > array).
        tm = min(block_rows, max(sublanes, (N // sublanes) * sublanes))

        # Guarantee >= 2 grid tiles when N allows it, so v7x's two TensorCores
        # both get work via the "parallel" grid axis (neutral on 1-TC chips).
        if N >= 2 * sublanes:
            half_aligned = ((pl.cdiv(N, 2) + sublanes - 1) // sublanes) * sublanes
            tm = min(tm, half_aligned)

    num_tiles = pl.cdiv(N, tm)

    targets_2d = targets.astype(jnp.int32).reshape(N, 1)
    kernel = functools.partial(
        _phuber_ce_kernel, tau=float(tau), boundary=math.log(float(tau)) + 1.0)

    per_row_loss = pl.pallas_call(
        kernel,
        out_shape=jax.ShapeDtypeStruct((N, 1), jnp.float32),
        grid=(num_tiles,),
        in_specs=[
            pl.BlockSpec((tm, C), lambda i: (i, 0)),
            pl.BlockSpec((tm, 1), lambda i: (i, 0)),
        ],
        out_specs=pl.BlockSpec((tm, 1), lambda i: (i, 0)),
        compiler_params=pltpu.CompilerParams(
            dimension_semantics=("parallel",),
            vmem_limit_bytes=vmem_limit),
        cost_estimate=pl.CostEstimate(
            flops=5 * N * C,
            transcendentals=N * C + 2 * N,
            bytes_accessed=N * C * itemsize + N * 4 + N * 4),
    )(logits, targets_2d)

    # Final mean over the tiny (N, 1) per-row loss vector in plain JAX.
    return jnp.mean(per_row_loss)


def _phuber_reference(logits, targets, tau):
    # Pure-JAX reference for correctness checking.
    p = jax.nn.softmax(logits.astype(jnp.float32), axis=1)
    p_t = p[jnp.arange(p.shape[0]), targets]
    loss = jnp.where(p_t <= 1.0 / tau,
                     -tau * p_t + (math.log(tau) + 1.0),
                     -jnp.log(p_t))
    return jnp.mean(loss)


if __name__ == "__main__":
    key = jax.random.PRNGKey(0)
    k1, k2, k3, k4, k5, k6 = jax.random.split(key, 6)

    tau = 10.0

    # Case 1: small f32 minibatch (N=16, C=37); default sizing gives 2 tiles
    # of 8 rows, exercising the multi-tile / megacore path.
    N, C = 16, 37
    logits_f32 = jax.random.normal(k1, (N, C), dtype=jnp.float32) * 3.0
    targets = jax.random.randint(k2, (N,), 0, C, dtype=jnp.int32)
    out = jax.block_until_ready(phuber_cross_entropy(logits_f32, targets, tau=tau))
    ref = _phuber_reference(logits_f32, targets, tau)
    assert jnp.allclose(out, ref, atol=1e-5, rtol=1e-4), (out, ref)

    # Case 2: bf16 logits passed through in native dtype (no wrapper upcast).
    logits_bf16 = logits_f32.astype(jnp.bfloat16)
    out_bf16 = jax.block_until_ready(phuber_cross_entropy(logits_bf16, targets, tau=tau))
    ref_bf16 = _phuber_reference(logits_bf16, targets, tau)
    assert jnp.allclose(out_bf16, ref_bf16, atol=2e-3, rtol=2e-3), (out_bf16, ref_bf16)

    # Case 3: explicit small block -> 3-tile grid with a partial last row block
    # (N=20, TM=8).
    N2, C2 = 20, 37
    logits2 = jax.random.normal(k3, (N2, C2), dtype=jnp.float32) * 3.0
    targets2 = jax.random.randint(k4, (N2,), 0, C2, dtype=jnp.int32)
    out2 = jax.block_until_ready(
        phuber_cross_entropy(logits2, targets2, tau=tau, block_rows=8))
    ref2 = _phuber_reference(logits2, targets2, tau)
    assert jnp.allclose(out2, ref2, atol=1e-5, rtol=1e-4), (out2, ref2)

    # Case 4: tiny batch smaller than one sublane group (N=4 < 8); tm == N.
    N3, C3 = 4, 37
    logits3 = jax.random.normal(k5, (N3, C3), dtype=jnp.float32) * 3.0
    targets3 = jax.random.randint(k6, (N3,), 0, C3, dtype=jnp.int32)
    out3 = jax.block_until_ready(phuber_cross_entropy(logits3, targets3, tau=tau))
    ref3 = _phuber_reference(logits3, targets3, tau)
    assert jnp.allclose(out3, ref3, atol=1e-5, rtol=1e-4), (out3, ref3)

    print("KERNEL_OK")
</pallas_src>

<mosaic_0001>
module attributes {stable_mosaic.version = 11 : i64} {
  func.func @_phuber_ce_kernel(%arg0: i32, %arg1: memref<8x37xf32, #tpu.memory_space<vmem>>, %arg2: memref<8x1xi32, #tpu.memory_space<vmem>>, %arg3: memref<8x1xf32, #tpu.memory_space<vmem>>) attributes {dimension_semantics = [#tpu.dimension_semantics<parallel>], iteration_bounds = array<i64: 2>, scalar_prefetch = 0 : i64, scratch_operands = 0 : i64, tpu.core_type = #tpu.core_type<tc>, window_params = [{transform_indices = @transform_0, window_bounds = array<i64: 8, 37>}, {transform_indices = @transform_1, window_bounds = array<i64: 8, 1>}, {transform_indices = @transform_2, window_bounds = array<i64: 8, 1>}]} {
    %c0 = arith.constant 0 : index
    %c0_0 = arith.constant 0 : index
    %0 = vector.load %arg1[%c0, %c0_0] : memref<8x37xf32, #tpu.memory_space<vmem>>, vector<8x37xf32>
    %c0_1 = arith.constant 0 : index
    %c0_2 = arith.constant 0 : index
    %1 = vector.load %arg2[%c0_1, %c0_2] : memref<8x1xi32, #tpu.memory_space<vmem>>, vector<8x1xi32>
    %cst = arith.constant dense<0xFF800000> : vector<8xf32>
    %2 = vector.multi_reduction <maximumf>, %0, %cst [1] : vector<8x37xf32> to vector<8xf32>
    %3 = vector.shape_cast %2 : vector<8xf32> to vector<8x1xf32>
    %4 = vector.broadcast %3 : vector<8x1xf32> to vector<8x37xf32>
    %5 = arith.subf %0, %4 : vector<8x37xf32>
    %6 = math.exp %5 : vector<8x37xf32>
    %cst_3 = arith.constant dense<0.000000e+00> : vector<8xf32>
    %7 = vector.multi_reduction <add>, %6, %cst_3 [1] : vector<8x37xf32> to vector<8xf32>
    %8 = vector.shape_cast %7 : vector<8xf32> to vector<8x1xf32>
    %9 = tpu.iota {dimensions = array<i32: 1>} : vector<8x37xi32>
    %10 = vector.broadcast %1 : vector<8x1xi32> to vector<8x37xi32>
    %11 = arith.cmpi eq, %9, %10 : vector<8x37xi32>
    %cst_4 = arith.constant 0.000000e+00 : f32
    %12 = vector.broadcast %cst_4 : f32 to vector<8x37xf32>
    %13 = arith.select %11, %5, %12 : vector<8x37xi1>, vector<8x37xf32>
    %cst_5 = arith.constant dense<0.000000e+00> : vector<8xf32>
    %14 = vector.multi_reduction <add>, %13, %cst_5 [1] : vector<8x37xf32> to vector<8xf32>
    %15 = vector.shape_cast %14 : vector<8xf32> to vector<8x1xf32>
    %16 = math.log %8 : vector<8x1xf32>
    %17 = arith.subf %15, %16 : vector<8x1xf32>
    %18 = math.exp %17 : vector<8x1xf32>
    %cst_6 = arith.constant 1.000000e-01 : f32
    %19 = vector.broadcast %cst_6 : f32 to vector<8x1xf32>
    %20 = arith.cmpf ole, %18, %19 : vector<8x1xf32>
    %cst_7 = arith.constant -1.000000e+01 : f32
    %21 = vector.broadcast %cst_7 : f32 to vector<8x1xf32>
    %22 = arith.mulf %21, %18 : vector<8x1xf32>
    %cst_8 = arith.constant 3.30258512 : f32
    %23 = vector.broadcast %cst_8 : f32 to vector<8x1xf32>
    %24 = arith.addf %22, %23 : vector<8x1xf32>
    %cst_9 = arith.constant 0.000000e+00 : f32
    %25 = vector.broadcast %cst_9 : f32 to vector<8x1xf32>
    %26 = arith.subf %25, %17 : vector<8x1xf32>
    %27 = arith.select %20, %24, %26 : vector<8x1xi1>, vector<8x1xf32>
    %c0_10 = arith.constant 0 : index
    %c0_11 = arith.constant 0 : index
    %28 = vector.load %arg3[%c0_10, %c0_11] : memref<8x1xf32, #tpu.memory_space<vmem>>, vector<8x1xf32>
    tpu.vector_store %arg3[%c0_10, %c0_11], %27 {strides = array<i32>} : memref<8x1xf32, #tpu.memory_space<vmem>>, vector<8x1xf32>,
    return
  }
  func.func @transform_0(%arg0: i32) -> (i32, i32) {
    %c0_i32 = arith.constant 0 : i32
    %c0_i32_0 = arith.constant 0 : i32
    return %arg0, %c0_i32 : i32, i32
  }
  func.func @transform_1(%arg0: i32) -> (i32, i32) {
    %c0_i32 = arith.constant 0 : i32
    %c0_i32_0 = arith.constant 0 : i32
    return %arg0, %c0_i32 : i32, i32
  }
  func.func @transform_2(%arg0: i32) -> (i32, i32) {
    %c0_i32 = arith.constant 0 : i32
    %c0_i32_0 = arith.constant 0 : i32
    return %arg0, %c0_i32 : i32, i32
  }
}

</mosaic_0001>

<llo_original>
// kernel: tpu_custom_call.1
$region0: #{tpu_custom_call.1}
  #allocation0 [shape = 'u32[]', space=smem, size = 0x4, offset = 0x4, fixed_abs, tag = 'smem constant byte address 0x4 - core index']
  #allocation1 [shape = 'u32[144,128]{1,0:T(1,128)}', space=vmem, size = 0x12000, scoped, tag = 'internal scratch']
  %s0 = inlined_call_operand.vmem [shape: f32[16,37], index: 0, kind: input, shape index: {}]
  %s1 = inlined_call_operand.vmem [shape: s32[16,1], index: 1, kind: input, shape index: {}]
  %s2 = inlined_call_operand.vmem [shape: f32[16,1], index: 2, kind: output, shape index: {}]
  %s3 = sld [smem:[#allocation0]]
  $region41: #{tpu_custom_call.1} parent=0
    _
  %s5 = ssub.s32 1, %s3
  %s6 = scalar_select 0, %s5, %s3
  loop: start=0, step=1, limit=4
  $region2: #{tpu_custom_call.1} parent=0 // loop_pre_header
    _
  $region3: #{tpu_custom_call.1} parent=0 // loop_header
    %s8 = sphi 0, %s12
    %p9 = scmp.ge.s32.totalorder %s8, 4
    %s18 = sphi 0, %s20
    %s21 = sphi 0, %s18
    %s22 = sphi 0, %s21
    %s38 = sphi 0, %s22
    %s44 = sphi 0, %s46
    %s47 = sphi 0, %s44
    %s48 = sphi 0, %s47
    %s64 = sphi 0, %s48
    %s70 = sphi 0, %s72
    %s73 = sphi 0, %s70
    %s74 = sphi 0, %s73
    %s90 = sphi 0, %s74
  $region4: #{tpu_custom_call.1} parent=0 // loop_header_branch
    %11 = sbr.rel (%p9) target = $region8
  $region5: #{tpu_custom_call.1} parent=0 // loop_body
    %s13 = ssub.s32 %s8, 1
    %s14 = ssub.s32 %s8, 2
    %s15 = sadd.s32 %s8, 1
    %s16 = ssub.s32 %s8, %s15
    %p17 = scmp.eq.s32.totalorder %s16, 0
    %s19 = sadd.s32 %s18, 1
    %s20 = scalar_select %p17, %s18, %s19
    %p23 = pneg %p17
    %p24 = scmp.eq.s32.totalorder %s8, 1
    %p25 = por %p23, %p24
    %p26 = scmp.ne.s32.totalorder %s18, %s21
    %p27 = scmp.eq.s32.totalorder %s8, 0
    %p28 = por %p26, %p27
    %p29 = scmp.ne.s32.totalorder %s18, %s21
    %p30 = scmp.eq.s32.totalorder %s13, 1
    %p31 = por %p29, %p30
    %p32 = scmp.ne.s32.totalorder %s21, %s22
    %p33 = scmp.eq.s32.totalorder %s13, 0
    %p34 = por %p32, %p33
    %p35 = scmp.ne.s32.totalorder %s21, %s22
    %p36 = scmp.eq.s32.totalorder %s14, 1
    %p37 = por %p35, %p36
    %p39 = scmp.ne.s32.totalorder %s22, %s38
    %p40 = scmp.eq.s32.totalorder %s14, 0
    %p41 = por %p39, %p40
    %s42 = ssub.s32 %s8, %s15
    %p43 = scmp.eq.s32.totalorder %s42, 0
    %s45 = sadd.s32 %s44, 1
    %s46 = scalar_select %p43, %s44, %s45
    %p49 = pneg %p43
    %p50 = scmp.eq.s32.totalorder %s8, 1
    %p51 = por %p49, %p50
    %p52 = scmp.ne.s32.totalorder %s44, %s47
    %p53 = scmp.eq.s32.totalorder %s8, 0
    %p54 = por %p52, %p53
    %p55 = scmp.ne.s32.totalorder %s44, %s47
    %p56 = scmp.eq.s32.totalorder %s13, 1
    %p57 = por %p55, %p56
    %p58 = scmp.ne.s32.totalorder %s47, %s48
    %p59 = scmp.eq.s32.totalorder %s13, 0
    %p60 = por %p58, %p59
    %p61 = scmp.ne.s32.totalorder %s47, %s48
    %p62 = scmp.eq.s32.totalorder %s14, 1
    %p63 = por %p61, %p62
    %p65 = scmp.ne.s32.totalorder %s48, %s64
    %p66 = scmp.eq.s32.totalorder %s14, 0
    %p67 = por %p65, %p66
    %s68 = ssub.s32 %s8, %s15
    %p69 = scmp.eq.s32.totalorder %s68, 0
    %s71 = sadd.s32 %s70, 1
    %s72 = scalar_select %p69, %s70, %s71
    %p75 = pneg %p69
    %p76 = scmp.eq.s32.totalorder %s8, 1
    %p77 = por %p75, %p76
    %p78 = scmp.ne.s32.totalorder %s70, %s73
    %p79 = scmp.eq.s32.totalorder %s8, 0
    %p80 = por %p78, %p79
    %p81 = scmp.ne.s32.totalorder %s70, %s73
    %p82 = scmp.eq.s32.totalorder %s13, 1
    %p83 = por %p81, %p82
    %p84 = scmp.ne.s32.totalorder %s73, %s74
    %p85 = scmp.eq.s32.totalorder %s13, 0
    %p86 = por %p84, %p85
    %p87 = scmp.ne.s32.totalorder %s73, %s74
    %p88 = scmp.eq.s32.totalorder %s14, 1
    %p89 = por %p87, %p88
    %p91 = scmp.ne.s32.totalorder %s74, %s90
    %p92 = scmp.eq.s32.totalorder %s14, 0
    %p93 = por %p91, %p92
    %p94 = scmp.le.s32.totalorder 1, %s8
    %p95 = scmp.lt.s32.totalorder %s8, 3
    %p96 = pnand %p94, %p95
    %p97 = pneg %p96
    // Predicated region
    $region9: #{tpu_custom_call.1} parent=5 // pred_check
      _
    $region10: #{tpu_custom_call.1} parent=5 // pred_check_branch
      %99 = sbr.rel (%p96) target = $region12
    $region11: #{tpu_custom_call.1} parent=5 // pred_region
      %s100 = ssub.s32 %s8, 1
    $region12: #{tpu_custom_call.1} parent=5 // pred_fallthru
      _
    %p101 = scmp.lt.s32.totalorder %s8, 2
    // Predicated region
    $region13: #{tpu_custom_call.1} parent=5 // pred_check
      %p102 = pneg %p101
    $region14: #{tpu_custom_call.1} parent=5 // pred_check_branch
      %104 = sbr.rel (%p102) target = $region16
    $region15: #{tpu_custom_call.1} parent=5 // pred_region
      // Predicated region
      $region17: #{tpu_custom_call.1} parent=15 // pred_check
        %p105 = pneg %p28
      $region18: #{tpu_custom_call.1} parent=15 // pred_check_branch
        %107 = sbr.rel (%p105) target = $region20
      $region19: #{tpu_custom_call.1} parent=15 // pred_region
        %p108 = scmp.lt.s32.totalorder %s8, 1
        %s109 = scalar_select %p108, %s8, 1
        %s110 = smul.addr %s109, 8
        %s111 = scalar_lea.vmem %s0, %s110
      $region20: #{tpu_custom_call.1} parent=15 // pred_fallthru
        _
      // Predicated region
      $region21: #{tpu_custom_call.1} parent=15 // pred_check
        %p112 = pneg %p54
      $region22: #{tpu_custom_call.1} parent=15 // pred_check_branch
        %114 = sbr.rel (%p112) target = $region24
      $region23: #{tpu_custom_call.1} parent=15 // pred_region
        %p115 = scmp.lt.s32.totalorder %s8, 1
        %s116 = scalar_select %p115, %s8, 1
        %s117 = smul.addr %s116, 8
        %s118 = scalar_lea.vmem %s1, %s117
      $region24: #{tpu_custom_call.1} parent=15 // pred_fallthru
        _
    $region16: #{tpu_custom_call.1} parent=5 // pred_fallthru
      _
    %p119 = scmp.le.s32.totalorder 1, %s8
    %p120 = scmp.lt.s32.totalorder %s8, 3
    %p121 = pnand %p119, %p120
    %p122 = pneg %p121
    // Predicated region
    $region25: #{tpu_custom_call.1} parent=5 // pred_check
      _
    $region26: #{tpu_custom_call.1} parent=5 // pred_check_branch
      %124 = sbr.rel (%p121) target = $region28
    $region27: #{tpu_custom_call.1} parent=5 // pred_region
      %s125 = ssub.s32 %s8, 1
      %p126 = scmp.lt.s32.totalorder %s13, 1
      %s127 = scalar_select %p126, %s13, 1
      %s128 = smul.addr %s127, 8
      %s129 = scalar_lea.vmem %s0, %s128
      %p130 = pneg %p34
      %p131 = pneg %p31
      %p132 = scmp.lt.s32.totalorder %s13, 1
      %s133 = scalar_select %p132, %s13, 1
      %s134 = smul.addr %s133, 8
      %s135 = scalar_lea.vmem %s1, %s134
      %p136 = pneg %p60
      %p137 = pneg %p57
      %p138 = pneg %p86
      %p139 = pneg %p83
      %p140 = scmp.lt.s32.totalorder %s13, 1
      %s141 = scalar_select %p140, %s13, 1
      %s142 = smul.addr %s141, 8
      %s143 = scalar_lea.vmem %s2, %s142
      %p144 = scmp.lt.s32.totalorder %s13, 1
      %s145 = scalar_select %p144, %s13, 1
      %s146 = smul.addr %s145, 8
      %s147 = scalar_lea.vmem %s0, %s146
      %p148 = scmp.lt.s32.totalorder %s13, 1
      %s149 = scalar_select %p148, %s13, 1
      %s150 = smul.addr %s149, 8
      %s151 = scalar_lea.vmem %s1, %s150
      %p152 = scmp.lt.s32.totalorder %s13, 1
      %s153 = scalar_select %p152, %s13, 1
      %s154 = smul.addr %s153, 8
      %s155 = scalar_lea.vmem %s2, %s154
      %v156 = vld [vmem:[%s147] sm:$0xff]
      %v157 = vld [vmem:[%s151] sm:$0xff]
      %vm158 = vcmask 302080
      %v159 = vsel %vm158, %v156, -inf
      %160 = vmax.xlane.f32.xlu0 %v159
      %v161 = vpop.xlane.xlu0 %160
      %v162 = vsub.f32 %v156, %v161
      %v163 = vmul.f32 %v162, 1.442695
      %v164 = vpow.pop %v163
      %v165 = vsel %vm158, %v164, 0.0
      %166 = vadd.xlane.f32.xlu0 %v165
      %v167 = vpop.xlane.xlu0 %166
      %v168 = vlaneseq
      %v169 = vand.u32 %v168, 127
      %170 = vset.pattern.permute.xlu0 0
      %171 = vperm.xlu0 %170, %v157
      %v172 = vpop.permute.xlu0 %171
      %vm173 = vcmp.eq.s32.totalorder %v169, %v172
      %v174 = vsel %vm173, %v162, 0.0
      %v175 = vsel %vm158, %v174, 0.0
      %176 = vadd.xlane.f32.xlu0 %v175
      %v177 = vpop.xlane.xlu0 %176
      %v178 = vlog2.pop %v167
      %v179 = vmul.f32 %v178, 0.6931472
      %v180 = vsub.f32 %v177, %v179
      %v181 = vmul.f32 %v180, 1.442695
      %v182 = vpow.pop %v181
      %vm183 = vcmp.le.f32.partialorder %v182, 0.1
      %v184 = vmul.f32 %v182, -10.0
      %v185 = vadd.f32 %v184, 3.3025851
      %v186 = vsub.f32 0.0, %v180
      %v187 = vsel %vm183, %v185, %v186
      %vm188 = vcmask 7168
      %189 = vst.msk [vmem:[%s155] sm:$0xff] %vm188, %v187
      %p190 = scmp.lt.s32.totalorder %s13, 1
      %s191 = scalar_select %p190, %s13, 1
      %s192 = smul.addr %s191, 8
      %s193 = scalar_lea.vmem %s2, %s192
      // Predicated region
      $region29: #{tpu_custom_call.1} parent=27 // pred_check
        %p194 = pneg %p83
      $region30: #{tpu_custom_call.1} parent=27 // pred_check_branch
        %196 = sbr.rel (%p194) target = $region32
      $region31: #{tpu_custom_call.1} parent=27 // pred_region
        _
      $region32: #{tpu_custom_call.1} parent=27 // pred_fallthru
        _
    $region28: #{tpu_custom_call.1} parent=5 // pred_fallthru
      _
    %p197 = scmp.le.s32.totalorder 2, %s8
    // Predicated region
    $region33: #{tpu_custom_call.1} parent=5 // pred_check
      %p198 = pneg %p197
    $region34: #{tpu_custom_call.1} parent=5 // pred_check_branch
      %200 = sbr.rel (%p198) target = $region36
    $region35: #{tpu_custom_call.1} parent=5 // pred_region
      %s201 = ssub.s32 %s8, 2
      // Predicated region
      $region37: #{tpu_custom_call.1} parent=35 // pred_check
        %p202 = pneg %p89
      $region38: #{tpu_custom_call.1} parent=35 // pred_check_branch
        %204 = sbr.rel (%p202) target = $region40
      $region39: #{tpu_custom_call.1} parent=35 // pred_region
        %p205 = scmp.lt.s32.totalorder %s14, 1
        %s206 = scalar_select %p205, %s14, 1
        %s207 = smul.addr %s206, 8
        %s208 = scalar_lea.vmem %s2, %s207
      $region40: #{tpu_custom_call.1} parent=35 // pred_fallthru
        _
    $region36: #{tpu_custom_call.1} parent=5 // pred_fallthru
      _
  $region6: #{tpu_custom_call.1} parent=0 // loop_footer
    %s12 = sadd.s32 1, %s8
  $region7: #{tpu_custom_call.1} parent=0 // loop_footer_branch
    %7 = sbr.rel target = $region3
  $region8: #{tpu_custom_call.1} parent=0 // loop_exit
    _

</llo_original>
